<compile_context>
chip_gen: v7x
topology: tpu7x:2x2x1
jax: 0.10.0
libtpu: 0.0.40
codegen_flags: <defaults>
</compile_context>

<pallas_src>
import numpy as np
import jax
import jax.numpy as jnp
from jax import lax
from jax.experimental import pallas as pl
from jax.experimental.pallas import tpu as pltpu


def init_bilinear_np(shape):
    """Literal (Python-3 float-division) translation of the reference init_bilinear."""
    weight = np.zeros(int(np.prod(shape)), dtype="float32")
    f = np.ceil(shape[3] / 2.0)
    c = (2 * f - 1 - f % 2) / (2.0 * f)
    for i in range(int(np.prod(shape))):
        x = i % shape[3]
        y = (i / shape[3]) % shape[2]          # float division, as in the spec
        weight[i] = (1 - abs(x / f - c)) * (1 - abs(y / f - c))
    return weight.reshape(shape)


def _pick_block(total, quantum, limit, min_steps=1):
    """Block size along one axis.

    Returns a multiple of `quantum` that is <= `limit` and <= `total` (edge blocks are
    only ever partial, never oversized) and, when possible, small enough that
    cdiv(total, block) >= min_steps so the grid actually pipelines and both v7x
    TensorCores get work.  If total < quantum, returns `total` (full-dim block).
    """
    if total < quantum:
        return total
    blk = max(quantum, (min(limit, total) // quantum) * quantum)
    if min_steps > 1:
        target = ((total // min_steps) // quantum) * quantum
        blk = min(blk, target) if target >= quantum else quantum
    return blk


# ---------------- Pallas kernels ----------------

def _conv1x1_kernel(x_ref, w_ref, b_ref, o_ref):
    # x: [1, Cin, S_blk] (bf16)   w: [Cout, Cin] (bf16)   b: [Cout, 1] f32
    # o: [1, Cout, S_blk] f32
    acc = jnp.dot(w_ref[...], x_ref[0], preferred_element_type=jnp.float32)
    o_ref[0] = (acc + b_ref[...]).astype(o_ref.dtype)


def _upsample_kernel(y_ref, ew_ref, k_ref, o_ref):
    # y : [R_blk, W] f32       rows of the conv output, one row per (n, c, h)
    # ew: [W, s*W] f32         0/1 column-repeat matrix (lane expansion on the MXU)
    # k : [s, s*W] f32         tiled s x s deconv kernel, k[i, s*w + j] = K[i, j]
    # o : [R_blk, s, s*W] f32  the NCHW output viewed as [N*C*H, s, s*W]
    k = k_ref[...]                                    # load first: Refs can't be None-indexed
    t = jnp.dot(y_ref[...], ew_ref[...],
                precision=lax.Precision.HIGHEST,      # exact f32 copy through the 0/1 matrix
                preferred_element_type=jnp.float32)   # t[r, s*w + j] = y[r, w]
    # TODO(synk): if a v7x bundle dump shows this broadcast materializing a
    # [R_blk, s, s*W] VMEM temp, restructure as an unrolled fori_loop over ~256-row chunks.
    o_ref[...] = (t[:, None, :] * k[None, :, :]).astype(o_ref.dtype)


# ---------------- Wrapper ----------------

def res5_output_forward(x, conv_w, conv_b, up_w, scale=8,
                        compute_dtype=jnp.bfloat16,
                        conv_s_block_max=1024, up_block_bytes=8 << 20,
                        vmem_limit_bytes=40 << 20):
    """x: [N, Cin, H, W] NCHW -> [N, Cout, scale*H, scale*W] NCHW (f32)."""
    N, Cin, H, W = x.shape
    Cout = conv_w.shape[0]
    S = H * W

    # ---- Kernel 1: 1x1 conv as [Cout, Cin] @ [Cin, S_blk] (+ bias), NCHW-native ----
    x3 = x.reshape(N, Cin, S).astype(compute_dtype)        # bf16 halves the dominant HBM read
    w2 = conv_w.reshape(Cout, Cin).astype(compute_dtype)
    b2 = conv_b.reshape(Cout, 1).astype(jnp.float32)

    s_blk = _pick_block(S, quantum=128, limit=conv_s_block_max,
                        min_steps=pl.cdiv(8, N))           # >= ~8 total grid steps
    ns = pl.cdiv(S, s_blk)

    y = pl.pallas_call(
        _conv1x1_kernel,
        grid=(N, ns),
        in_specs=[
            pl.BlockSpec((1, Cin, s_blk), lambda n, s: (n, 0, s)),
            pl.BlockSpec((Cout, Cin), lambda n, s: (0, 0)),
            pl.BlockSpec((Cout, 1), lambda n, s: (0, 0)),
        ],
        out_specs=pl.BlockSpec((1, Cout, s_blk), lambda n, s: (n, 0, s)),
        out_shape=jax.ShapeDtypeStruct((N, Cout, S), jnp.float32),
        compiler_params=pltpu.CompilerParams(
            dimension_semantics=("parallel", "parallel"),
            vmem_limit_bytes=vmem_limit_bytes),
    )(x3, w2, b2)

    # ---- Kernel 2: non-overlapping stride-`scale` upsample (grouped deconv) ----
    # kernel_size == stride == scale, padding=0 => out[n,c,s*h+i,s*w+j] = y[n,c,h,w]*K[i,j].
    # init_bilinear gives every channel the identical scale x scale kernel, so one shared K
    # is exact here.
    # TODO(synk): trained / per-channel deconv weights would need a per-channel multiplier
    # (or a channel grid axis) instead of this single shared K.
    K = jnp.asarray(up_w, dtype=jnp.float32)[0, 0]                         # [s, s]
    ew = jnp.kron(jnp.eye(W, dtype=jnp.float32),
                  jnp.ones((1, scale), jnp.float32))                       # [W, s*W]
    krow = jnp.tile(K, (1, W))                                             # [s, s*W]

    R = N * Cout * H
    y_rows = y.reshape(R, W)                            # metadata reshape, stays in HBM
    bytes_per_row = scale * scale * W * 4
    row_limit = max(8, up_block_bytes // bytes_per_row)
    r_blk = _pick_block(R, quantum=8, limit=row_limit, min_steps=8)

    out3 = pl.pallas_call(
        _upsample_kernel,
        grid=(pl.cdiv(R, r_blk),),
        in_specs=[
            pl.BlockSpec((r_blk, W), lambda i: (i, 0)),
            pl.BlockSpec((W, scale * W), lambda i: (0, 0)),
            pl.BlockSpec((scale, scale * W), lambda i: (0, 0)),
        ],
        out_specs=pl.BlockSpec((r_blk, scale, scale * W), lambda i: (i, 0, 0)),
        out_shape=jax.ShapeDtypeStruct((R, scale, scale * W), jnp.float32),
        compiler_params=pltpu.CompilerParams(
            dimension_semantics=("parallel",),
            vmem_limit_bytes=vmem_limit_bytes),
    )(y_rows, ew, krow)

    # [N*C*H, s, s*W] row-major is exactly [N, C, s*H, s*W] row-major.
    return out3.reshape(N, Cout, scale * H, scale * W)


if __name__ == "__main__":
    N, Cin, H, W = 2, 32, 16, 16        # num_output=32 (small stand-in for 2048)
    num_class = 4
    scale = 8

    key = jax.random.PRNGKey(0)
    k1, k2, k3 = jax.random.split(key, 3)
    x = jax.random.normal(k1, (N, Cin, H, W), dtype=jnp.float32)
    conv_w = 0.05 * jax.random.normal(k2, (num_class, Cin, 1, 1), dtype=jnp.float32)
    conv_b = 0.10 * jax.random.normal(k3, (num_class,), dtype=jnp.float32)
    up_w = jnp.asarray(init_bilinear_np((num_class, 1, scale, scale)))   # deconv weight

    out = res5_output_forward(x, conv_w, conv_b, up_w, scale)
    out = jax.block_until_ready(out)

    # Host (numpy, f32-accumulated) reference: 1x1 conv + grouped kernel-8 stride-8
    # pad-0 ConvTranspose2d.  The kernel reads x / conv_w in bf16, so round the
    # reference inputs identically; only accumulation-order noise remains.
    x_np = np.asarray(x.astype(jnp.bfloat16), dtype=np.float32)
    w_np = np.asarray(conv_w.astype(jnp.bfloat16), dtype=np.float32).reshape(num_class, Cin)
    b_np = np.asarray(conv_b, dtype=np.float32)
    y_ref = np.einsum("nchw,oc->nohw", x_np, w_np) + b_np[None, :, None, None]
    K_np = np.asarray(up_w, dtype=np.float32)[:, 0]                      # [C, 8, 8]
    ref = (y_ref[:, :, :, None, :, None] *
           K_np[None, :, None, :, None, :]).reshape(N, num_class, scale * H, scale * W)

    out_np = np.asarray(out)
    assert out.shape == (N, num_class, scale * H, scale * W)
    assert np.allclose(out_np, ref, atol=2e-3, rtol=2e-3), \
        float(np.max(np.abs(out_np - ref)))
    print("KERNEL_OK")
</pallas_src>

<mosaic_0001>
module attributes {stable_mosaic.version = 11 : i64} {
  func.func @_conv1x1_kernel(%arg0: i32, %arg1: i32, %arg2: memref<1x32x128xbf16, #tpu.memory_space<vmem>>, %arg3: memref<4x32xbf16, #tpu.memory_space<vmem>>, %arg4: memref<4x1xf32, #tpu.memory_space<vmem>>, %arg5: memref<1x4x128xf32, #tpu.memory_space<vmem>>) attributes {dimension_semantics = [#tpu.dimension_semantics<parallel>, #tpu.dimension_semantics<parallel>], iteration_bounds = array<i64: 2, 2>, scalar_prefetch = 0 : i64, scratch_operands = 0 : i64, tpu.core_type = #tpu.core_type<tc>, window_params = [{transform_indices = @transform_0, window_bounds = array<i64: 1, 32, 128>}, {pipeline_mode = #tpu.pipeline_mode<synchronous>, transform_indices = @transform_1, window_bounds = array<i64: 4, 32>}, {pipeline_mode = #tpu.pipeline_mode<synchronous>, transform_indices = @transform_2, window_bounds = array<i64: 4, 1>}, {transform_indices = @transform_3, window_bounds = array<i64: 1, 4, 128>}]} {
    %c0 = arith.constant 0 : index
    %c0_0 = arith.constant 0 : index
    %0 = vector.load %arg3[%c0, %c0_0] : memref<4x32xbf16, #tpu.memory_space<vmem>>, vector<4x32xbf16>
    %c0_1 = arith.constant 0 : index
    %c0_2 = arith.constant 0 : index
    %c0_3 = arith.constant 0 : index
    %1 = vector.load %arg2[%c0_1, %c0_2, %c0_3] : memref<1x32x128xbf16, #tpu.memory_space<vmem>>, vector<1x32x128xbf16>
    %2 = vector.shape_cast %1 : vector<1x32x128xbf16> to vector<32x128xbf16>
    %cst = arith.constant dense<0.000000e+00> : vector<4x128xf32>
    %3 = tpu.matmul %0, %2, %cst {dimension_numbers = #tpu.dot_dimension_numbers<[1], [0], [0], [1], [0, 0, 1, 1], [], []>} : vector<4x32xbf16>, vector<32x128xbf16>, vector<4x128xf32> -> vector<4x128xf32>
    %c0_4 = arith.constant 0 : index
    %c0_5 = arith.constant 0 : index
    %4 = vector.load %arg4[%c0_4, %c0_5] : memref<4x1xf32, #tpu.memory_space<vmem>>, vector<4x1xf32>
    %5 = vector.broadcast %4 : vector<4x1xf32> to vector<4x128xf32>
    %6 = arith.addf %3, %5 : vector<4x128xf32>
    %c0_6 = arith.constant 0 : index
    %c0_7 = arith.constant 0 : index
    %c0_8 = arith.constant 0 : index
    %7 = vector.load %arg5[%c0_6, %c0_7, %c0_8] : memref<1x4x128xf32, #tpu.memory_space<vmem>>, vector<1x4x128xf32>
    %8 = vector.shape_cast %7 : vector<1x4x128xf32> to vector<4x128xf32>
    %9 = vector.shape_cast %6 : vector<4x128xf32> to vector<1x4x128xf32>
    tpu.vector_store %arg5[%c0_6, %c0_7, %c0_8], %9 {strides = array<i32>} : memref<1x4x128xf32, #tpu.memory_space<vmem>>, vector<1x4x128xf32>,
    return
  }
  func.func @transform_0(%arg0: i32, %arg1: i32) -> (i32, i32, i32) {
    %c0_i32 = arith.constant 0 : i32
    %c0_i32_0 = arith.constant 0 : i32
    return %arg0, %c0_i32, %arg1 : i32, i32, i32
  }
  func.func @transform_1(%arg0: i32, %arg1: i32) -> (i32, i32) {
    %c0_i32 = arith.constant 0 : i32
    %c0_i32_0 = arith.constant 0 : i32
    %c0_i32_1 = arith.constant 0 : i32
    return %c0_i32, %c0_i32_0 : i32, i32
  }
  func.func @transform_2(%arg0: i32, %arg1: i32) -> (i32, i32) {
    %c0_i32 = arith.constant 0 : i32
    %c0_i32_0 = arith.constant 0 : i32
    %c0_i32_1 = arith.constant 0 : i32
    return %c0_i32, %c0_i32_0 : i32, i32
  }
  func.func @transform_3(%arg0: i32, %arg1: i32) -> (i32, i32, i32) {
    %c0_i32 = arith.constant 0 : i32
    %c0_i32_0 = arith.constant 0 : i32
    return %arg0, %c0_i32, %arg1 : i32, i32, i32
  }
}

</mosaic_0001>

<llo_original>
// kernel: tpu_custom_call.1
$region0: #{tpu_custom_call.1}
  #allocation0 [shape = 'u32[]', space=smem, size = 0x4, offset = 0x4, fixed_abs, tag = 'smem constant byte address 0x4 - core index']
  #allocation1 [shape = 'u32[144,128]{1,0:T(1,128)}', space=vmem, size = 0x12000, scoped, tag = 'internal scratch']
  %s0 = inlined_call_operand.hbm [shape: bf16[2,32,256], index: 0, kind: input, shape index: {}]
  %s1 = inlined_call_operand.vmem [shape: bf16[4,32], index: 1, kind: input, shape index: {}]
  %s2 = inlined_call_operand.vmem [shape: f32[4,1], index: 2, kind: input, shape index: {}]
  %s3 = inlined_call_operand.hbm [shape: f32[2,4,256], index: 3, kind: output, shape index: {}]
  %s4 = sld [smem:[#allocation0]]
  $region49: #{tpu_custom_call.1} parent=0
    _
  %s6 = ssub.s32 1, %s4
  %s7 = scalar_select 0, %s6, %s4
  $region1: #{tpu_custom_call.1} parent=0
    #allocation2 [shape = 'u8[16384]{0}', space=vmem, size = 0x4000, scoped, tag = 'input window, operand 0']
    #allocation3 [shape = 's32[2]{0}', space=sflag, size = 0x8, scoped, tag = 'scoped memory for tpu_custom_call.1']
    #allocation4 [shape = 's32[2]{0}', space=sflag, size = 0x8, scoped, tag = 'scoped memory for tpu_custom_call.1']
    #allocation5 [shape = 'u8[4096]{0}', space=vmem, size = 0x1000, scoped, tag = 'output window, operand 0']
    %8 = vsyncpa [#allocation3], 0
    %s9 = scalar_lea.sflag [#allocation3], 1
    %10 = vsyncpa %s9, 0
    %11 = vsyncpa [#allocation4], 0
    %s12 = scalar_lea.sflag [#allocation4], 1
    %13 = vsyncpa %s12, 0
    loop: start=0, step=1, limit=6
    $region2: #{tpu_custom_call.1} parent=1 // loop_pre_header
      _
    $region3: #{tpu_custom_call.1} parent=1 // loop_header
      %s15 = sphi 0, %s19
      %p16 = scmp.ge.s32.totalorder %s15, 6
      %s22 = sphi 0, %s34
      %s23 = sphi 0, %s30
      %s24 = sphi 0, %s22
      %s25 = sphi 0, %s23
      %s26 = sphi 0, %s24
      %s27 = sphi 0, %s25
      %s39 = sphi 0, %s41
      %s42 = sphi 0, %s39
      %s43 = sphi 0, %s42
      %s59 = sphi 0, %s43
      %s63 = sphi 0, %s63
      %s65 = sphi 0, %s63
      %s66 = sphi 0, %s65
      %s80 = sphi 0, %s66
      %s84 = sphi 0, %s84
      %s86 = sphi 0, %s84
      %s87 = sphi 0, %s86
      %s101 = sphi 0, %s87
      %s109 = sphi 0, %s111
      %s112 = sphi 0, %s109
      %s113 = sphi 0, %s112
      %s129 = sphi 0, %s113
    $region4: #{tpu_custom_call.1} parent=1 // loop_header_branch
      %18 = sbr.rel (%p16) target = $region8
    $region5: #{tpu_custom_call.1} parent=1 // loop_body
      %s20 = ssub.s32 %s15, 1
      %s21 = ssub.s32 %s15, 2
      %s28 = sadd.s32 1, %s23
      %p29 = scmp.ge.s32.totalorder %s28, 2
      %s30 = scalar_select %p29, 0, %s28
      %s31 = sadd.s32 1, %s22
      %s32 = scalar_select %p29, %s31, %s22
      %p33 = scmp.ge.s32.totalorder %s32, 2
      %s34 = scalar_select %p33, 0, %s32
      %s35 = ssub.s32 %s22, %s34
      %s36 = ssub.s32 %s23, %s30
      %s37 = sor.u32 %s35, %s36
      %p38 = scmp.eq.s32.totalorder %s37, 0
      %s40 = sadd.s32 %s39, 1
      %s41 = scalar_select %p38, %s39, %s40
      %p44 = pneg %p38
      %p45 = scmp.eq.s32.totalorder %s15, 3
      %p46 = por %p44, %p45
      %p47 = scmp.ne.s32.totalorder %s39, %s42
      %p48 = scmp.eq.s32.totalorder %s15, 0
      %p49 = por %p47, %p48
      %p50 = scmp.ne.s32.totalorder %s39, %s42
      %p51 = scmp.eq.s32.totalorder %s20, 3
      %p52 = por %p50, %p51
      %p53 = scmp.ne.s32.totalorder %s42, %s43
      %p54 = scmp.eq.s32.totalorder %s20, 0
      %p55 = por %p53, %p54
      %p56 = scmp.ne.s32.totalorder %s42, %s43
      %p57 = scmp.eq.s32.totalorder %s21, 3
      %p58 = por %p56, %p57
      %p60 = scmp.ne.s32.totalorder %s43, %s59
      %p61 = scmp.eq.s32.totalorder %s21, 0
      %p62 = por %p60, %p61
      %s64 = sadd.s32 %s63, 1
      %p67 = scmp.eq.s32.totalorder %s15, 3
      %p68 = scmp.ne.s32.totalorder %s63, %s65
      %p69 = scmp.eq.s32.totalorder %s15, 0
      %p70 = por %p68, %p69
      %p71 = scmp.ne.s32.totalorder %s63, %s65
      %p72 = scmp.eq.s32.totalorder %s20, 3
      %p73 = por %p71, %p72
      %p74 = scmp.ne.s32.totalorder %s65, %s66
      %p75 = scmp.eq.s32.totalorder %s20, 0
      %p76 = por %p74, %p75
      %p77 = scmp.ne.s32.totalorder %s65, %s66
      %p78 = scmp.eq.s32.totalorder %s21, 3
      %p79 = por %p77, %p78
      %p81 = scmp.ne.s32.totalorder %s66, %s80
      %p82 = scmp.eq.s32.totalorder %s21, 0
      %p83 = por %p81, %p82
      %s85 = sadd.s32 %s84, 1
      %p88 = scmp.eq.s32.totalorder %s15, 3
      %p89 = scmp.ne.s32.totalorder %s84, %s86
      %p90 = scmp.eq.s32.totalorder %s15, 0
      %p91 = por %p89, %p90
      %p92 = scmp.ne.s32.totalorder %s84, %s86
      %p93 = scmp.eq.s32.totalorder %s20, 3
      %p94 = por %p92, %p93
      %p95 = scmp.ne.s32.totalorder %s86, %s87
      %p96 = scmp.eq.s32.totalorder %s20, 0
      %p97 = por %p95, %p96
      %p98 = scmp.ne.s32.totalorder %s86, %s87
      %p99 = scmp.eq.s32.totalorder %s21, 3
      %p100 = por %p98, %p99
      %p102 = scmp.ne.s32.totalorder %s87, %s101
      %p103 = scmp.eq.s32.totalorder %s21, 0
      %p104 = por %p102, %p103
      %s105 = ssub.s32 %s22, %s34
      %s106 = ssub.s32 %s23, %s30
      %s107 = sor.u32 %s105, %s106
      %p108 = scmp.eq.s32.totalorder %s107, 0
      %s110 = sadd.s32 %s109, 1
      %s111 = scalar_select %p108, %s109, %s110
      %p114 = pneg %p108
      %p115 = scmp.eq.s32.totalorder %s15, 3
      %p116 = por %p114, %p115
      %p117 = scmp.ne.s32.totalorder %s109, %s112
      %p118 = scmp.eq.s32.totalorder %s15, 0
      %p119 = por %p117, %p118
      %p120 = scmp.ne.s32.totalorder %s109, %s112
      %p121 = scmp.eq.s32.totalorder %s20, 3
      %p122 = por %p120, %p121
      %p123 = scmp.ne.s32.totalorder %s112, %s113
      %p124 = scmp.eq.s32.totalorder %s20, 0
      %p125 = por %p123, %p124
      %p126 = scmp.ne.s32.totalorder %s112, %s113
      %p127 = scmp.eq.s32.totalorder %s21, 3
      %p128 = por %p126, %p127
      %p130 = scmp.ne.s32.totalorder %s113, %s129
      %p131 = scmp.eq.s32.totalorder %s21, 0
      %p132 = por %p130, %p131
      %p133 = scmp.le.s32.totalorder 1, %s15
      %p134 = scmp.lt.s32.totalorder %s15, 5
      %p135 = pnand %p133, %p134
      %p136 = pneg %p135
      // Predicated region
      $region9: #{tpu_custom_call.1} parent=5 // pred_check
        _
      $region10: #{tpu_custom_call.1} parent=5 // pred_check_branch
        %138 = sbr.rel (%p135) target = $region12
      $region11: #{tpu_custom_call.1} parent=5 // pred_region
        %s139 = ssub.s32 %s15, 1
        // Predicated region
        $region13: #{tpu_custom_call.1} parent=11 // pred_check
          %p140 = pneg %p76
        $region14: #{tpu_custom_call.1} parent=11 // pred_check_branch
          %142 = sbr.rel (%p140) target = $region16
        $region15: #{tpu_custom_call.1} parent=11 // pred_region
          _
        $region16: #{tpu_custom_call.1} parent=11 // pred_fallthru
          _
        // Predicated region
        $region17: #{tpu_custom_call.1} parent=11 // pred_check
          %p143 = pneg %p97
        $region18: #{tpu_custom_call.1} parent=11 // pred_check_branch
          %145 = sbr.rel (%p143) target = $region20
        $region19: #{tpu_custom_call.1} parent=11 // pred_region
          _
        $region20: #{tpu_custom_call.1} parent=11 // pred_fallthru
          _
      $region12: #{tpu_custom_call.1} parent=5 // pred_fallthru
        _
      %p146 = scmp.lt.s32.totalorder %s15, 4
      // Predicated region
      $region21: #{tpu_custom_call.1} parent=5 // pred_check
        %p147 = pneg %p146
      $region22: #{tpu_custom_call.1} parent=5 // pred_check_branch
        %149 = sbr.rel (%p147) target = $region24
      $region23: #{tpu_custom_call.1} parent=5 // pred_region
        // Predicated region
        $region25: #{tpu_custom_call.1} parent=23 // pred_check
          %p150 = pneg %p49
        $region26: #{tpu_custom_call.1} parent=23 // pred_check_branch
          %152 = sbr.rel (%p150) target = $region28
        $region27: #{tpu_custom_call.1} parent=23 // pred_region
          %s153 = sand.u32 %s39, 1
          %s154 = scalar_lea.sflag [#allocation3], %s153
          %s155 = sand.u32 %s39, 1
          %s156 = smul.addr %s155, 16
          %s157 = scalar_lea.vmem [#allocation2], %s156
          %s159 = ssub.s32 256, 256
          %160 = vsyncadd %s154, %s159
          %s161 = smul.addr %s22, 8
          %s162 = sadd.s32 %s23, %s161
          %s163 = smul.addr %s162, 64
          %s164 = scalar_lea.hbm %s0, %s163
          %s165 = sshll.u32 %s157, 4
          %s166 = int_to_ptr.vmem [resolvable:$true] %s165
          %171 = dma.hbm_to_vmem [thread:$0]  %s164, 256, %s166, %s154, 128, 64, 4
        $region28: #{tpu_custom_call.1} parent=23 // pred_fallthru
          _
      $region24: #{tpu_custom_call.1} parent=5 // pred_fallthru
        _
      %p172 = scmp.le.s32.totalorder 1, %s15
      %p173 = scmp.lt.s32.totalorder %s15, 5
      %p174 = pnand %p172, %p173
      %p175 = pneg %p174
      // Predicated region
      $region29: #{tpu_custom_call.1} parent=5 // pred_check
        _
      $region30: #{tpu_custom_call.1} parent=5 // pred_check_branch
        %177 = sbr.rel (%p174) target = $region32
      $region31: #{tpu_custom_call.1} parent=5 // pred_region
        %s178 = ssub.s32 %s15, 1
        %s179 = sand.u32 %s42, 1
        %s180 = scalar_lea.sflag [#allocation3], %s179
        %s181 = sand.u32 %s42, 1
        %s182 = smul.addr %s181, 16
        %s183 = scalar_lea.vmem [#allocation2], %s182
        // Predicated region
        $region33: #{tpu_custom_call.1} parent=31 // pred_check
          %p184 = pneg %p55
        $region34: #{tpu_custom_call.1} parent=31 // pred_check_branch
          %186 = sbr.rel (%p184) target = $region36
        $region35: #{tpu_custom_call.1} parent=31 // pred_region
          %187 = dma.done %s180, 256
        $region36: #{tpu_custom_call.1} parent=31 // pred_fallthru
          _
        %s188 = sand.u32 %s42, 1
        %s189 = scalar_lea.sflag [#allocation3], %s188
        %s190 = sand.u32 %s42, 1
        %s191 = smul.addr %s190, 16
        %s192 = scalar_lea.vmem [#allocation2], %s191
        %p193 = pneg %p55
        %p194 = pneg %p52
        %p195 = pneg %p76
        %p196 = pneg %p73
        %p197 = pneg %p97
        %p198 = pneg %p94
        %p199 = pneg %p125
        %p200 = pneg %p122
        %s201 = sand.u32 %s112, 1
        %s202 = scalar_lea.sflag [#allocation4], %s201
        %s203 = sand.u32 %s112, 1
        %s204 = smul.addr %s203, 4
        %s205 = scalar_lea.vmem [#allocation5], %s204
        %v207 = vld [vmem:[%s1] sm:$0x3]
        %v208 = vld [vmem:[%s183] sm:$0xf]
        %v209 = vld [vmem:[%s183 + $0x4] sm:$0xf]
        %v210 = vld [vmem:[%s183 + $0x8] sm:$0xf]
        %v211 = vld [vmem:[%s183 + $0xc] sm:$0xf]
        %v212 = vld [vmem:[%s2] sm:$0xf]
        %214 = vset.pattern.permute.xlu0 0
        %215 = vperm.xlu0 %214, %v212
        %v216 = vpop.permute.xlu0 %215
        %v222 = vunpack.c.l.b16 %v208
        %v223 = vunpack.c.l.b16 %v209
        %v224 = vunpack.c.l.b16 %v210
        %v225 = vunpack.c.l.b16 %v211
        %v226 = vpack.c.b16 %v223, %v222
        %v227 = vpack.c.b16 %v225, %v224
        %vm230 = vcmask 261120
        %v232 = vsel %vm230, %v207, 0
        %234 = vmatprep.subr.bf16.mxu0 0
        %235 = vmatpush1.bf16.msra.mxu0 %v226
        %236 = vmatprep.subr.bf16.mxu0 0
        %237 = vmatpush1.bf16.msra.mxu0 %v227
        %238 = vmatprep.subr.bf16.mxu0 0
        %239 = vmatpush1.bf16.msra.mxu0 0
        %240 = vmatprep.subr.bf16.mxu0 0
        %241 = vmatpush1.bf16.msra.mxu0 0
        %242 = vmatprep.subr.bf16.mxu0 0
        %243 = vmatpush1.bf16.msra.mxu0 0
        %244 = vmatprep.subr.bf16.mxu0 0
        %245 = vmatpush1.bf16.msra.mxu0 0
        %246 = vmatprep.subr.bf16.mxu0 0
        %247 = vmatpush1.bf16.msra.mxu0 0
        %248 = vmatprep.subr.bf16.mxu0 0
        %249 = vmatpush1.bf16.msra.mxu0 0
        %250 = vmatprep.subr.bf16.mxu0 0
        %251 = vmatpush1.bf16.msra.mxu0 0
        %252 = vmatprep.subr.bf16.mxu0 0
        %253 = vmatpush1.bf16.msra.mxu0 0
        %254 = vmatprep.subr.bf16.mxu0 0
        %255 = vmatpush1.bf16.msra.mxu0 0
        %256 = vmatprep.subr.bf16.mxu0 0
        %257 = vmatpush1.bf16.msra.mxu0 0
        %258 = vmatprep.subr.bf16.mxu0 0
        %259 = vmatpush1.bf16.msra.mxu0 0
        %260 = vmatprep.subr.bf16.mxu0 0
        %261 = vmatpush1.bf16.msra.mxu0 0
        %262 = vmatprep.subr.bf16.mxu0 0
        %263 = vmatpush1.bf16.msra.mxu0 0
        %264 = vmatprep.subr.bf16.mxu0 0
        %265 = vmatpush1.bf16.msra.mxu0 0
        %266 = vmatprep.mubr.bf16.mxu0 0
        %267 = vmatmul.mubr.bf16.gmra.mrb[0].mxu0 %v232
        %v268 = vpop.f32.mrb[0].mxu0
        %v269 = vadd.f32 %v216, %v268
        %v270 = vpop.f32.mrb[0].mxu0
        %v271 = vpop.f32.mrb[0].mxu0
        %v272 = vpop.f32.mrb[0].mxu0
        %273 = vdwg.mxu0
        %274 = vst [vmem:[%s205] sm:$0xf] %v269
        %s275 = sand.u32 %s112, 1
        %s276 = scalar_lea.sflag [#allocation4], %s275
        %s277 = sand.u32 %s112, 1
        %s278 = smul.addr %s277, 4
        %s279 = scalar_lea.vmem [#allocation5], %s278
        // Predicated region
        $region37: #{tpu_custom_call.1} parent=31 // pred_check
          %p280 = pneg %p122
        $region38: #{tpu_custom_call.1} parent=31 // pred_check_branch
          %282 = sbr.rel (%p280) target = $region40
        $region39: #{tpu_custom_call.1} parent=31 // pred_region
          %s284 = ssub.s32 64, 64
          %285 = vsyncadd %s276, %s284
          %s286 = smul.addr %s24, 2
          %s287 = sadd.s32 %s25, %s286
          %s288 = smul.addr %s287, 64
          %s289 = scalar_lea.hbm %s3, %s288
          %s291 = sshll.u32 %s279, 4
          %s292 = int_to_ptr.vmem [resolvable:$true] %s291
          %294 = dma.vmem_to_hbm [thread:$0]  %s292, 64, %s289, %s276
        $region40: #{tpu_custom_call.1} parent=31 // pred_fallthru
          _
      $region32: #{tpu_custom_call.1} parent=5 // pred_fallthru
        _
      %p295 = scmp.le.s32.totalorder 2, %s15
      // Predicated region
      $region41: #{tpu_custom_call.1} parent=5 // pred_check
        %p296 = pneg %p295
      $region42: #{tpu_custom_call.1} parent=5 // pred_check_branch
        %298 = sbr.rel (%p296) target = $region44
      $region43: #{tpu_custom_call.1} parent=5 // pred_region
        %s299 = ssub.s32 %s15, 2
        // Predicated region
        $region45: #{tpu_custom_call.1} parent=43 // pred_check
          %p300 = pneg %p128
        $region46: #{tpu_custom_call.1} parent=43 // pred_check_branch
          %302 = sbr.rel (%p300) target = $region48
        $region47: #{tpu_custom_call.1} parent=43 // pred_region
          %s303 = sand.u32 %s113, 1
          %s304 = scalar_lea.sflag [#allocation4], %s303
          %s305 = sand.u32 %s113, 1
          %s306 = smul.addr %s305, 4
          %s307 = scalar_lea.vmem [#allocation5], %s306
          %308 = dma.done %s304, 64
        $region48: #{tpu_custom_call.1} parent=43 // pred_fallthru
          _
      $region44: #{tpu_custom_call.1} parent=5 // pred_fallthru
        _
    $region6: #{tpu_custom_call.1} parent=1 // loop_footer
      %s19 = sadd.s32 1, %s15
    $region7: #{tpu_custom_call.1} parent=1 // loop_footer_branch
      %14 = sbr.rel target = $region3
    $region8: #{tpu_custom_call.1} parent=1 // loop_exit
      _
    %309 = vsyncpa [#allocation3], 1
    %s310 = scalar_lea.sflag [#allocation3], 1
    %311 = vsyncpa %s310, 1
    %312 = vsyncpa [#allocation4], 1
    %s313 = scalar_lea.sflag [#allocation4], 1
    %314 = vsyncpa %s313, 1

</llo_original>
